<compile_context>
chip_gen: v7x
topology: tpu7x:2x2x1
jax: 0.10.0
libtpu: 0.0.40
codegen_flags: <defaults>
</compile_context>

<pallas_src>
import jax
import jax.numpy as jnp
from jax import lax
from jax.experimental import pallas as pl
from jax.experimental.pallas import tpu as pltpu


# --------------------------------------------------------------------------
# Kernel
# --------------------------------------------------------------------------
def _convt3x3_relu_kernel(x_ref, band_ref, bias_ref, mu_ref, md_ref, o_ref):
    """One batch-block (whole images) per grid step.

    x_ref    : (NB*H, W*Cin)        activations (HBM dtype), W on the lane axis
    band_ref : (3, W*Cin, W*Cout)   banded weights, one matrix per kh tap
    bias_ref : (1, W*Cout)          bias tiled over W (f32)
    mu_ref   : (NB*H, 1)            f32 mask: row h-1 exists (h > 0)
    md_ref   : (NB*H, 1)            f32 mask: row h+1 exists (h < H-1)
    o_ref    : (NB*H, W*Cout)       output, lane-dense
    """
    M = x_ref.shape[0]                                # NB * H (static)
    x32 = x_ref[...].astype(jnp.float32)              # no-op for f32 inputs

    # H-direction halo via sublane roll (XLU) + precomputed row masks (VPU).
    # Correct because each block holds whole images (mb = nb*H).
    x_up = pltpu.roll(x32, 1, 0) * mu_ref[...]        # row h-1, zero at h==0
    x_dn = pltpu.roll(x32, M - 1, 0) * md_ref[...]    # row h+1, zero at h==H-1

    bdt = band_ref.dtype                              # compute dtype (f32/bf16)
    acc = jnp.dot(x_up.astype(bdt), band_ref[0], preferred_element_type=jnp.float32)
    acc += jnp.dot(x32.astype(bdt), band_ref[1], preferred_element_type=jnp.float32)
    acc += jnp.dot(x_dn.astype(bdt), band_ref[2], preferred_element_type=jnp.float32)
    acc += bias_ref[...]                              # (1, W*Cout) f32 broadcast
    o_ref[...] = jnp.maximum(acc, 0.0).astype(o_ref.dtype)


# --------------------------------------------------------------------------
# Weight folding
# --------------------------------------------------------------------------
def _band_weights(w_ct, W, dtype):
    """ConvTranspose2d weight (Cin, Cout, 3, 3) -> banded (3, W*Cin, W*Cout).

    Equivalent-conv weight = flip spatial + swap channel axes.  For each kh,
    the three kw taps and the W-direction zero padding are folded into one
    banded matrix:  B_kh[w_in*Cin + ci, w_out*Cout + co] = w_conv[kh, kw, ci, co]
    with w_in = w_out + kw - 1 (entries outside [0, W) simply absent).
    """
    Cin, Cout = w_ct.shape[0], w_ct.shape[1]
    w_conv = jnp.flip(w_ct, axis=(2, 3)).transpose(2, 3, 0, 1)  # (3,3,Cin,Cout)
    w_conv = w_conv.astype(jnp.float32)
    bands = []
    for kh in range(3):
        bk = jnp.zeros((W, Cin, W, Cout), jnp.float32)
        for kw in range(3):
            sel = jnp.eye(W, W, k=1 - kw, dtype=jnp.float32)    # w_in = w_out + kw - 1
            bk = bk + sel[:, None, :, None] * w_conv[kh, kw][None, :, None, :]
        bands.append(bk.reshape(W * Cin, W * Cout))
    # TODO(synk): for large W (and channels) the folded band weight grows as
    # O(W^2*Cin*Cout); tile W (band becomes block-diagonal) before that point.
    return jnp.stack(bands).astype(dtype)


# --------------------------------------------------------------------------
# VMEM accounting / block sizing
# --------------------------------------------------------------------------
def _vmem_capacity_bytes():
    """Physical per-core VMEM; conservative 64 MiB (v7x) fallback."""
    try:
        info = pltpu.get_tpu_info()
        cap = getattr(info, "vmem_capacity_bytes", None)
        if cap:
            return int(cap)
    except Exception:
        pass
    return 64 * 1024 * 1024


def _vmem_block_bytes(rows, cols, itemsize):
    """Conservative VMEM footprint of one (rows, cols) block (32-bit tiling)."""
    rr = -(-rows // 8) * 8
    cc = -(-cols // 128) * 128
    return rr * cc * itemsize


def _pick_images_per_block(N, H, per_img_bytes, stream_budget, row_align):
    """Pick images-per-grid-step: largest divisor of N that
       * keeps the row block `row_align`-aligned (or is the full array),
       * fits the (already double-buffer-accounted) stream budget,
       * keeps the grid >= 2 steps (prefer an even count) so both v7x
         TensorCores get work under dimension_semantics=("parallel",)."""
    divisors = [nb for nb in range(1, N + 1) if N % nb == 0]
    valid = [nb for nb in divisors
             if ((nb * H) % row_align == 0) or nb == N] or divisors
    fitting = [nb for nb in valid if nb * per_img_bytes <= stream_budget]
    if not fitting:
        # TODO(synk): if even one image overflows the budget (large H*W), add
        # an H-row grid axis with a manually DMA'd 1-row halo instead of
        # whole images (the roll+mask trick needs whole images per block).
        return min(valid)
    multi = [nb for nb in fitting if N // nb >= 2]
    if multi:
        even = [nb for nb in multi if (N // nb) % 2 == 0]
        return max(even if even else multi)
    return max(fitting)


# --------------------------------------------------------------------------
# Entry points
# --------------------------------------------------------------------------
def dconv_block_nhwc(x_nhwc, w_ct, bias, *, compute_dtype=None):
    """NHWC entry point (preferred: avoids NCHW<->NHWC HBM round trips).

    x_nhwc : (N, H, W, Cin)
    w_ct   : (Cin, Cout, 3, 3)   PyTorch ConvTranspose2d weight layout
    bias   : (Cout,)
    Returns (N, H, W, Cout) in `compute_dtype` (default: x dtype).
    """
    N, H, W, Cin = x_nhwc.shape
    Cout = w_ct.shape[1]
    out_dt = jnp.dtype(compute_dtype) if compute_dtype is not None else x_nhwc.dtype

    band = _band_weights(w_ct, W, out_dt)                        # (3, W*Cin, W*Cout)
    bias_row = jnp.tile(bias.astype(jnp.float32), W)[None, :]    # (1, W*Cout) f32
    # Activations stay in their HBM dtype; any cast to the compute dtype
    # happens in-register inside the kernel (no extra HBM cast pass).
    x2 = x_nhwc.reshape(N * H, W * Cin)
    # TODO(synk): if W*Cout is not a multiple of 128, pad Cout in band/bias so
    # the output stays lane-dense (unmasked vst) and slice after the call.

    # ---- generation-aware block sizing with honest VMEM accounting --------
    cap = _vmem_capacity_bytes()
    target_total = min(int(cap * 0.6), 48 << 20)   # total VMEM target, all buffers
    x_item = jnp.dtype(x2.dtype).itemsize
    o_item = jnp.dtype(out_dt).itemsize
    b_item = jnp.dtype(out_dt).itemsize
    resident = 2 * (3 * _vmem_block_bytes(W * Cin, W * Cout, b_item)   # band (2 bufs)
                    + _vmem_block_bytes(1, W * Cout, 4))               # bias (2 bufs)
    per_img = 2 * (_vmem_block_bytes(H, W * Cin, x_item)               # input block
                   + _vmem_block_bytes(H, W * Cout, o_item)            # output block
                   + 2 * _vmem_block_bytes(H, 1, 4))                   # two row masks
    row_align = 16 if o_item == 2 else 8           # bf16 packs 2 rows / sublane
    nb = _pick_images_per_block(N, H, per_img,
                                max(target_total - resident, 1 << 20), row_align)
    mb = nb * H
    grid = (N // nb,)

    # H-boundary masks, hoisted out of the per-step body (valid for every
    # block because each block contains whole images).
    rows = jnp.arange(mb, dtype=jnp.int32) % H
    mask_up = (rows > 0).astype(jnp.float32)[:, None]        # (mb, 1)
    mask_dn = (rows < H - 1).astype(jnp.float32)[:, None]    # (mb, 1)

    vmem_limit = int(min(max(resident + nb * per_img + (8 << 20), 32 << 20),
                         int(cap * 0.75)))

    # Note: f32 inputs use the MXU's default reduced-precision f32 matmul;
    # pass precision=lax.Precision.HIGHEST in the dots if bit-parity with the
    # PyTorch reference is required (mem-bound here, so it would be ~free).
    y2 = pl.pallas_call(
        _convt3x3_relu_kernel,
        out_shape=jax.ShapeDtypeStruct((N * H, W * Cout), out_dt),
        grid_spec=pltpu.PrefetchScalarGridSpec(
            num_scalar_prefetch=0,
            grid=grid,
            in_specs=[
                pl.BlockSpec((mb, W * Cin), lambda i: (i, 0)),
                pl.BlockSpec((3, W * Cin, W * Cout), lambda i: (0, 0, 0)),
                pl.BlockSpec((1, W * Cout), lambda i: (0, 0)),
                pl.BlockSpec((mb, 1), lambda i: (0, 0)),
                pl.BlockSpec((mb, 1), lambda i: (0, 0)),
            ],
            out_specs=pl.BlockSpec((mb, W * Cout), lambda i: (i, 0)),
        ),
        compiler_params=pltpu.CompilerParams(
            dimension_semantics=("parallel",),
            vmem_limit_bytes=vmem_limit,
        ),
    )(x2, band, bias_row, mask_up, mask_dn)
    return y2.reshape(N, H, W, Cout)


def dconv_block_nchw(x_nchw, w_ct, bias, **kwargs):
    """PyTorch-compatible boundary: NCHW in / NCHW out, ConvTranspose2d weights.

    TODO(synk): keep the surrounding pipeline NHWC end-to-end (or fuse the
    layout change into the kernel) — each transpose here is an extra full HBM
    read+write pass around a mem-bound op.
    """
    x_nhwc = jnp.transpose(x_nchw, (0, 2, 3, 1))
    y_nhwc = dconv_block_nhwc(x_nhwc, w_ct, bias, **kwargs)
    return jnp.transpose(y_nhwc, (0, 3, 1, 2))


# --------------------------------------------------------------------------
# Demo / correctness check
# --------------------------------------------------------------------------
if __name__ == "__main__":
    key = jax.random.PRNGKey(0)
    N, Cin, Cout, H, W = 2, 4, 8, 16, 16

    kx, kw_, kb = jax.random.split(key, 3)
    x = jax.random.normal(kx, (N, Cin, H, W), dtype=jnp.float32)
    # Deterministic init mimicking nn.ConvTranspose2d's kaiming-uniform bound.
    fan_in = Cin * 3 * 3
    bound = 1.0 / (fan_in ** 0.5)
    w = jax.random.uniform(kw_, (Cin, Cout, 3, 3), jnp.float32, -bound, bound)
    b = jax.random.uniform(kb, (Cout,), jnp.float32, -bound, bound)

    # Reference: ConvTranspose2d(k=3, stride=1, padding=1) + ReLU.
    y_ref = lax.conv_transpose(
        x, w, strides=(1, 1), padding=((1, 1), (1, 1)),
        dimension_numbers=("NCHW", "OIHW", "NCHW"),
        transpose_kernel=True, precision=lax.Precision.HIGHEST)
    y_ref = jnp.maximum(y_ref + b[None, :, None, None], 0.0)

    # PyTorch-layout boundary, f32 storage.  Tolerance covers the MXU's
    # default reduced-precision f32 matmul passes (signal is O(0.5)).
    y32 = jax.block_until_ready(dconv_block_nchw(x, w, b))
    assert y32.shape == (N, Cout, H, W)
    assert jnp.allclose(y32, y_ref, atol=2e-2, rtol=2e-2), \
        float(jnp.max(jnp.abs(y32 - y_ref)))

    # Preferred NHWC path with bf16 compute/storage (activations stay f32 in
    # HBM and are cast in-register inside the kernel; f32 MXU accumulation).
    x_nhwc = jnp.transpose(x, (0, 2, 3, 1))
    y16 = jax.block_until_ready(
        dconv_block_nhwc(x_nhwc, w, b, compute_dtype=jnp.bfloat16))
    assert y16.dtype == jnp.bfloat16
    y_ref_nhwc = jnp.transpose(y_ref, (0, 2, 3, 1))
    assert jnp.allclose(y16.astype(jnp.float32), y_ref_nhwc, atol=1e-1, rtol=5e-2), \
        float(jnp.max(jnp.abs(y16.astype(jnp.float32) - y_ref_nhwc)))

    print("KERNEL_OK")
</pallas_src>

<mosaic_0001>
module attributes {stable_mosaic.version = 11 : i64} {
  func.func @_convt3x3_relu_kernel(%arg0: i32, %arg1: memref<16x64xf32, #tpu.memory_space<vmem>>, %arg2: memref<3x64x128xf32, #tpu.memory_space<vmem>>, %arg3: memref<1x128xf32, #tpu.memory_space<vmem>>, %arg4: memref<16x1xf32, #tpu.memory_space<vmem>>, %arg5: memref<16x1xf32, #tpu.memory_space<vmem>>, %arg6: memref<16x128xf32, #tpu.memory_space<vmem>>) attributes {dimension_semantics = [#tpu.dimension_semantics<parallel>], iteration_bounds = array<i64: 2>, scalar_prefetch = 0 : i64, scratch_operands = 0 : i64, tpu.core_type = #tpu.core_type<tc>, window_params = [{transform_indices = @transform_0, window_bounds = array<i64: 16, 64>}, {pipeline_mode = #tpu.pipeline_mode<synchronous>, transform_indices = @transform_1, window_bounds = array<i64: 3, 64, 128>}, {pipeline_mode = #tpu.pipeline_mode<synchronous>, transform_indices = @transform_2, window_bounds = array<i64: 1, 128>}, {pipeline_mode = #tpu.pipeline_mode<synchronous>, transform_indices = @transform_3, window_bounds = array<i64: 16, 1>}, {pipeline_mode = #tpu.pipeline_mode<synchronous>, transform_indices = @transform_4, window_bounds = array<i64: 16, 1>}, {transform_indices = @transform_5, window_bounds = array<i64: 16, 128>}]} {
    %c0 = arith.constant 0 : index
    %c0_0 = arith.constant 0 : index
    %0 = vector.load %arg1[%c0, %c0_0] : memref<16x64xf32, #tpu.memory_space<vmem>>, vector<16x64xf32>
    %c1_i32 = arith.constant 1 : i32
    %1 = tpu.dynamic_rotate %0 by %c1_i32 dim 0 : vector<16x64xf32>, i32 -> vector<16x64xf32>
    %c0_1 = arith.constant 0 : index
    %c0_2 = arith.constant 0 : index
    %2 = vector.load %arg4[%c0_1, %c0_2] : memref<16x1xf32, #tpu.memory_space<vmem>>, vector<16x1xf32>
    %3 = vector.broadcast %2 : vector<16x1xf32> to vector<16x64xf32>
    %4 = arith.mulf %1, %3 : vector<16x64xf32>
    %c15_i32 = arith.constant 15 : i32
    %5 = tpu.dynamic_rotate %0 by %c15_i32 dim 0 : vector<16x64xf32>, i32 -> vector<16x64xf32>
    %c0_3 = arith.constant 0 : index
    %c0_4 = arith.constant 0 : index
    %6 = vector.load %arg5[%c0_3, %c0_4] : memref<16x1xf32, #tpu.memory_space<vmem>>, vector<16x1xf32>
    %7 = vector.broadcast %6 : vector<16x1xf32> to vector<16x64xf32>
    %8 = arith.mulf %5, %7 : vector<16x64xf32>
    %c0_5 = arith.constant 0 : index
    %c0_6 = arith.constant 0 : index
    %c0_7 = arith.constant 0 : index
    %9 = vector.load %arg2[%c0_5, %c0_6, %c0_7] : memref<3x64x128xf32, #tpu.memory_space<vmem>>, vector<1x64x128xf32>
    %10 = vector.shape_cast %9 : vector<1x64x128xf32> to vector<64x128xf32>
    %cst = arith.constant dense<0.000000e+00> : vector<16x128xf32>
    %11 = tpu.matmul %4, %10, %cst {dimension_numbers = #tpu.dot_dimension_numbers<[1], [0], [0], [1], [0, 0, 1, 1], [], []>} : vector<16x64xf32>, vector<64x128xf32>, vector<16x128xf32> -> vector<16x128xf32>
    %c1 = arith.constant 1 : index
    %c0_8 = arith.constant 0 : index
    %c0_9 = arith.constant 0 : index
    %12 = vector.load %arg2[%c1, %c0_8, %c0_9] : memref<3x64x128xf32, #tpu.memory_space<vmem>>, vector<1x64x128xf32>
    %13 = vector.shape_cast %12 : vector<1x64x128xf32> to vector<64x128xf32>
    %cst_10 = arith.constant dense<0.000000e+00> : vector<16x128xf32>
    %14 = tpu.matmul %0, %13, %cst_10 {dimension_numbers = #tpu.dot_dimension_numbers<[1], [0], [0], [1], [0, 0, 1, 1], [], []>} : vector<16x64xf32>, vector<64x128xf32>, vector<16x128xf32> -> vector<16x128xf32>
    %15 = arith.addf %11, %14 : vector<16x128xf32>
    %c2 = arith.constant 2 : index
    %c0_11 = arith.constant 0 : index
    %c0_12 = arith.constant 0 : index
    %16 = vector.load %arg2[%c2, %c0_11, %c0_12] : memref<3x64x128xf32, #tpu.memory_space<vmem>>, vector<1x64x128xf32>
    %17 = vector.shape_cast %16 : vector<1x64x128xf32> to vector<64x128xf32>
    %cst_13 = arith.constant dense<0.000000e+00> : vector<16x128xf32>
    %18 = tpu.matmul %8, %17, %cst_13 {dimension_numbers = #tpu.dot_dimension_numbers<[1], [0], [0], [1], [0, 0, 1, 1], [], []>} : vector<16x64xf32>, vector<64x128xf32>, vector<16x128xf32> -> vector<16x128xf32>
    %19 = arith.addf %15, %18 : vector<16x128xf32>
    %c0_14 = arith.constant 0 : index
    %c0_15 = arith.constant 0 : index
    %20 = vector.load %arg3[%c0_14, %c0_15] : memref<1x128xf32, #tpu.memory_space<vmem>>, vector<1x128xf32>
    %21 = vector.broadcast %20 : vector<1x128xf32> to vector<16x128xf32>
    %22 = arith.addf %19, %21 : vector<16x128xf32>
    %cst_16 = arith.constant 0.000000e+00 : f32
    %23 = vector.broadcast %cst_16 : f32 to vector<16x128xf32>
    %24 = arith.maximumf %22, %23 : vector<16x128xf32>
    %c0_17 = arith.constant 0 : index
    %c0_18 = arith.constant 0 : index
    %25 = vector.load %arg6[%c0_17, %c0_18] : memref<16x128xf32, #tpu.memory_space<vmem>>, vector<16x128xf32>
    tpu.vector_store %arg6[%c0_17, %c0_18], %24 {strides = array<i32>} : memref<16x128xf32, #tpu.memory_space<vmem>>, vector<16x128xf32>,
    return
  }
  func.func @transform_0(%arg0: i32) -> (i32, i32) {
    %c0_i32 = arith.constant 0 : i32
    %c0_i32_0 = arith.constant 0 : i32
    return %arg0, %c0_i32 : i32, i32
  }
  func.func @transform_1(%arg0: i32) -> (i32, i32, i32) {
    %c0_i32 = arith.constant 0 : i32
    %c0_i32_0 = arith.constant 0 : i32
    %c0_i32_1 = arith.constant 0 : i32
    %c0_i32_2 = arith.constant 0 : i32
    return %c0_i32, %c0_i32_0, %c0_i32_1 : i32, i32, i32
  }
  func.func @transform_2(%arg0: i32) -> (i32, i32) {
    %c0_i32 = arith.constant 0 : i32
    %c0_i32_0 = arith.constant 0 : i32
    %c0_i32_1 = arith.constant 0 : i32
    return %c0_i32, %c0_i32_0 : i32, i32
  }
  func.func @transform_3(%arg0: i32) -> (i32, i32) {
    %c0_i32 = arith.constant 0 : i32
    %c0_i32_0 = arith.constant 0 : i32
    %c0_i32_1 = arith.constant 0 : i32
    return %c0_i32, %c0_i32_0 : i32, i32
  }
  func.func @transform_4(%arg0: i32) -> (i32, i32) {
    %c0_i32 = arith.constant 0 : i32
    %c0_i32_0 = arith.constant 0 : i32
    %c0_i32_1 = arith.constant 0 : i32
    return %c0_i32, %c0_i32_0 : i32, i32
  }
  func.func @transform_5(%arg0: i32) -> (i32, i32) {
    %c0_i32 = arith.constant 0 : i32
    %c0_i32_0 = arith.constant 0 : i32
    return %arg0, %c0_i32 : i32, i32
  }
}

</mosaic_0001>

<llo_original>
// kernel: tpu_custom_call.1
$region0: #{tpu_custom_call.1}
  #allocation0 [shape = 'u32[]', space=smem, size = 0x4, offset = 0x4, fixed_abs, tag = 'smem constant byte address 0x4 - core index']
  #allocation1 [shape = 'u32[144,128]{1,0:T(1,128)}', space=vmem, size = 0x12000, scoped, tag = 'internal scratch']
  %s0 = inlined_call_operand.vmem [shape: f32[32,64], index: 0, kind: input, shape index: {}]
  %s1 = inlined_call_operand.hbm [shape: f32[3,64,128], index: 1, kind: input, shape index: {}]
  %s2 = inlined_call_operand.vmem [shape: f32[1,128], index: 2, kind: input, shape index: {}]
  %s3 = inlined_call_operand.vmem [shape: f32[16,1], index: 3, kind: input, shape index: {}]
  %s4 = inlined_call_operand.vmem [shape: f32[16,1], index: 4, kind: input, shape index: {}]
  %s5 = inlined_call_operand.hbm [shape: f32[32,128], index: 5, kind: output, shape index: {}]
  %s6 = sld [smem:[#allocation0]]
  $region57: #{tpu_custom_call.1} parent=0
    _
  %s8 = ssub.s32 1, %s6
  %s9 = scalar_select 0, %s8, %s6
  $region1: #{tpu_custom_call.1} parent=0
    #allocation2 [shape = 'u8[98304]{0}', space=vmem, size = 0x18000, scoped, tag = 'input window, operand 1, single buffered']
    #allocation3 [shape = 's32[2]{0}', space=sflag, size = 0x8, scoped, tag = 'scoped memory for tpu_custom_call.1']
    #allocation4 [shape = 's32[2]{0}', space=sflag, size = 0x8, scoped, tag = 'scoped memory for tpu_custom_call.1']
    #allocation5 [shape = 'u8[16384]{0}', space=vmem, size = 0x4000, scoped, tag = 'output window, operand 0']
    %10 = vsyncpa [#allocation3], 0
    %11 = vsyncpa [#allocation4], 0
    %s12 = scalar_lea.sflag [#allocation4], 1
    %13 = vsyncpa %s12, 0
    loop: start=0, step=1, limit=4
    $region2: #{tpu_custom_call.1} parent=1 // loop_pre_header
      _
    $region3: #{tpu_custom_call.1} parent=1 // loop_header
      %s15 = sphi 0, %s19
      %p16 = scmp.ge.s32.totalorder %s15, 4
      %s25 = sphi 0, %s27
      %s28 = sphi 0, %s25
      %s29 = sphi 0, %s28
      %s45 = sphi 0, %s29
      %s49 = sphi 0, %s49
      %s51 = sphi 0, %s49
      %s52 = sphi 0, %s51
      %s66 = sphi 0, %s52
      %s70 = sphi 0, %s70
      %s72 = sphi 0, %s70
      %s73 = sphi 0, %s72
      %s87 = sphi 0, %s73
      %s91 = sphi 0, %s91
      %s93 = sphi 0, %s91
      %s94 = sphi 0, %s93
      %s108 = sphi 0, %s94
      %s112 = sphi 0, %s112
      %s114 = sphi 0, %s112
      %s115 = sphi 0, %s114
      %s129 = sphi 0, %s115
      %s135 = sphi 0, %s137
      %s138 = sphi 0, %s135
      %s139 = sphi 0, %s138
      %s155 = sphi 0, %s139
    $region4: #{tpu_custom_call.1} parent=1 // loop_header_branch
      %18 = sbr.rel (%p16) target = $region8
    $region5: #{tpu_custom_call.1} parent=1 // loop_body
      %s20 = ssub.s32 %s15, 1
      %s21 = ssub.s32 %s15, 2
      %s22 = sadd.s32 %s15, 1
      %s23 = ssub.s32 %s15, %s22
      %p24 = scmp.eq.s32.totalorder %s23, 0
      %s26 = sadd.s32 %s25, 1
      %s27 = scalar_select %p24, %s25, %s26
      %p30 = pneg %p24
      %p31 = scmp.eq.s32.totalorder %s15, 1
      %p32 = por %p30, %p31
      %p33 = scmp.ne.s32.totalorder %s25, %s28
      %p34 = scmp.eq.s32.totalorder %s15, 0
      %p35 = por %p33, %p34
      %p36 = scmp.ne.s32.totalorder %s25, %s28
      %p37 = scmp.eq.s32.totalorder %s20, 1
      %p38 = por %p36, %p37
      %p39 = scmp.ne.s32.totalorder %s28, %s29
      %p40 = scmp.eq.s32.totalorder %s20, 0
      %p41 = por %p39, %p40
      %p42 = scmp.ne.s32.totalorder %s28, %s29
      %p43 = scmp.eq.s32.totalorder %s21, 1
      %p44 = por %p42, %p43
      %p46 = scmp.ne.s32.totalorder %s29, %s45
      %p47 = scmp.eq.s32.totalorder %s21, 0
      %p48 = por %p46, %p47
      %s50 = sadd.s32 %s49, 1
      %p53 = scmp.eq.s32.totalorder %s15, 1
      %p54 = scmp.ne.s32.totalorder %s49, %s51
      %p55 = scmp.eq.s32.totalorder %s15, 0
      %p56 = por %p54, %p55
      %p57 = scmp.ne.s32.totalorder %s49, %s51
      %p58 = scmp.eq.s32.totalorder %s20, 1
      %p59 = por %p57, %p58
      %p60 = scmp.ne.s32.totalorder %s51, %s52
      %p61 = scmp.eq.s32.totalorder %s20, 0
      %p62 = por %p60, %p61
      %p63 = scmp.ne.s32.totalorder %s51, %s52
      %p64 = scmp.eq.s32.totalorder %s21, 1
      %p65 = por %p63, %p64
      %p67 = scmp.ne.s32.totalorder %s52, %s66
      %p68 = scmp.eq.s32.totalorder %s21, 0
      %p69 = por %p67, %p68
      %s71 = sadd.s32 %s70, 1
      %p74 = scmp.eq.s32.totalorder %s15, 1
      %p75 = scmp.ne.s32.totalorder %s70, %s72
      %p76 = scmp.eq.s32.totalorder %s15, 0
      %p77 = por %p75, %p76
      %p78 = scmp.ne.s32.totalorder %s70, %s72
      %p79 = scmp.eq.s32.totalorder %s20, 1
      %p80 = por %p78, %p79
      %p81 = scmp.ne.s32.totalorder %s72, %s73
      %p82 = scmp.eq.s32.totalorder %s20, 0
      %p83 = por %p81, %p82
      %p84 = scmp.ne.s32.totalorder %s72, %s73
      %p85 = scmp.eq.s32.totalorder %s21, 1
      %p86 = por %p84, %p85
      %p88 = scmp.ne.s32.totalorder %s73, %s87
      %p89 = scmp.eq.s32.totalorder %s21, 0
      %p90 = por %p88, %p89
      %s92 = sadd.s32 %s91, 1
      %p95 = scmp.eq.s32.totalorder %s15, 1
      %p96 = scmp.ne.s32.totalorder %s91, %s93
      %p97 = scmp.eq.s32.totalorder %s15, 0
      %p98 = por %p96, %p97
      %p99 = scmp.ne.s32.totalorder %s91, %s93
      %p100 = scmp.eq.s32.totalorder %s20, 1
      %p101 = por %p99, %p100
      %p102 = scmp.ne.s32.totalorder %s93, %s94
      %p103 = scmp.eq.s32.totalorder %s20, 0
      %p104 = por %p102, %p103
      %p105 = scmp.ne.s32.totalorder %s93, %s94
      %p106 = scmp.eq.s32.totalorder %s21, 1
      %p107 = por %p105, %p106
      %p109 = scmp.ne.s32.totalorder %s94, %s108
      %p110 = scmp.eq.s32.totalorder %s21, 0
      %p111 = por %p109, %p110
      %s113 = sadd.s32 %s112, 1
      %p116 = scmp.eq.s32.totalorder %s15, 1
      %p117 = scmp.ne.s32.totalorder %s112, %s114
      %p118 = scmp.eq.s32.totalorder %s15, 0
      %p119 = por %p117, %p118
      %p120 = scmp.ne.s32.totalorder %s112, %s114
      %p121 = scmp.eq.s32.totalorder %s20, 1
      %p122 = por %p120, %p121
      %p123 = scmp.ne.s32.totalorder %s114, %s115
      %p124 = scmp.eq.s32.totalorder %s20, 0
      %p125 = por %p123, %p124
      %p126 = scmp.ne.s32.totalorder %s114, %s115
      %p127 = scmp.eq.s32.totalorder %s21, 1
      %p128 = por %p126, %p127
      %p130 = scmp.ne.s32.totalorder %s115, %s129
      %p131 = scmp.eq.s32.totalorder %s21, 0
      %p132 = por %p130, %p131
      %s133 = ssub.s32 %s15, %s22
      %p134 = scmp.eq.s32.totalorder %s133, 0
      %s136 = sadd.s32 %s135, 1
      %s137 = scalar_select %p134, %s135, %s136
      %p140 = pneg %p134
      %p141 = scmp.eq.s32.totalorder %s15, 1
      %p142 = por %p140, %p141
      %p143 = scmp.ne.s32.totalorder %s135, %s138
      %p144 = scmp.eq.s32.totalorder %s15, 0
      %p145 = por %p143, %p144
      %p146 = scmp.ne.s32.totalorder %s135, %s138
      %p147 = scmp.eq.s32.totalorder %s20, 1
      %p148 = por %p146, %p147
      %p149 = scmp.ne.s32.totalorder %s138, %s139
      %p150 = scmp.eq.s32.totalorder %s20, 0
      %p151 = por %p149, %p150
      %p152 = scmp.ne.s32.totalorder %s138, %s139
      %p153 = scmp.eq.s32.totalorder %s21, 1
      %p154 = por %p152, %p153
      %p156 = scmp.ne.s32.totalorder %s139, %s155
      %p157 = scmp.eq.s32.totalorder %s21, 0
      %p158 = por %p156, %p157
      %p159 = scmp.le.s32.totalorder 1, %s15
      %p160 = scmp.lt.s32.totalorder %s15, 3
      %p161 = pnand %p159, %p160
      %p162 = pneg %p161
      // Predicated region
      $region9: #{tpu_custom_call.1} parent=5 // pred_check
        _
      $region10: #{tpu_custom_call.1} parent=5 // pred_check_branch
        %164 = sbr.rel (%p161) target = $region12
      $region11: #{tpu_custom_call.1} parent=5 // pred_region
        %s165 = ssub.s32 %s15, 1
        // Predicated region
        $region13: #{tpu_custom_call.1} parent=11 // pred_check
          %p166 = pneg %p62
        $region14: #{tpu_custom_call.1} parent=11 // pred_check_branch
          %168 = sbr.rel (%p166) target = $region16
        $region15: #{tpu_custom_call.1} parent=11 // pred_region
          %s170 = ssub.s32 3072, 3072
          %171 = vsyncadd [#allocation3], %s170
          %s172 = sshll.u32 [#allocation2], 4
          %s173 = int_to_ptr.vmem [resolvable:$true] %s172
          %178 = dma.hbm_to_vmem [thread:$0]  %s1, 3072, %s173, [#allocation3], 128, 128, 8
        $region16: #{tpu_custom_call.1} parent=11 // pred_fallthru
          _
        // Predicated region
        $region17: #{tpu_custom_call.1} parent=11 // pred_check
          %p179 = pneg %p83
        $region18: #{tpu_custom_call.1} parent=11 // pred_check_branch
          %181 = sbr.rel (%p179) target = $region20
        $region19: #{tpu_custom_call.1} parent=11 // pred_region
          _
        $region20: #{tpu_custom_call.1} parent=11 // pred_fallthru
          _
        // Predicated region
        $region21: #{tpu_custom_call.1} parent=11 // pred_check
          %p182 = pneg %p104
        $region22: #{tpu_custom_call.1} parent=11 // pred_check_branch
          %184 = sbr.rel (%p182) target = $region24
        $region23: #{tpu_custom_call.1} parent=11 // pred_region
          _
        $region24: #{tpu_custom_call.1} parent=11 // pred_fallthru
          _
        // Predicated region
        $region25: #{tpu_custom_call.1} parent=11 // pred_check
          %p185 = pneg %p125
        $region26: #{tpu_custom_call.1} parent=11 // pred_check_branch
          %187 = sbr.rel (%p185) target = $region28
        $region27: #{tpu_custom_call.1} parent=11 // pred_region
          _
        $region28: #{tpu_custom_call.1} parent=11 // pred_fallthru
          _
      $region12: #{tpu_custom_call.1} parent=5 // pred_fallthru
        _
      %p188 = scmp.lt.s32.totalorder %s15, 2
      // Predicated region
      $region29: #{tpu_custom_call.1} parent=5 // pred_check
        %p189 = pneg %p188
      $region30: #{tpu_custom_call.1} parent=5 // pred_check_branch
        %191 = sbr.rel (%p189) target = $region32
      $region31: #{tpu_custom_call.1} parent=5 // pred_region
        // Predicated region
        $region33: #{tpu_custom_call.1} parent=31 // pred_check
          %p192 = pneg %p35
        $region34: #{tpu_custom_call.1} parent=31 // pred_check_branch
          %194 = sbr.rel (%p192) target = $region36
        $region35: #{tpu_custom_call.1} parent=31 // pred_region
          %s195 = smul.u32 2, %s15
          %p196 = scmp.lt.s32.totalorder %s195, 3
          %s197 = scalar_select %p196, %s195, 3
          %s198 = smul.addr %s197, 8
          %s199 = scalar_lea.vmem %s0, %s198
          %s200 = smul.u32 2, %s15
        $region36: #{tpu_custom_call.1} parent=31 // pred_fallthru
          _
      $region32: #{tpu_custom_call.1} parent=5 // pred_fallthru
        _
      %p201 = scmp.le.s32.totalorder 1, %s15
      %p202 = scmp.lt.s32.totalorder %s15, 3
      %p203 = pnand %p201, %p202
      %p204 = pneg %p203
      // Predicated region
      $region37: #{tpu_custom_call.1} parent=5 // pred_check
        _
      $region38: #{tpu_custom_call.1} parent=5 // pred_check_branch
        %206 = sbr.rel (%p203) target = $region40
      $region39: #{tpu_custom_call.1} parent=5 // pred_region
        %s207 = ssub.s32 %s15, 1
        // Predicated region
        $region41: #{tpu_custom_call.1} parent=39 // pred_check
          %p208 = pneg %p62
        $region42: #{tpu_custom_call.1} parent=39 // pred_check_branch
          %210 = sbr.rel (%p208) target = $region44
        $region43: #{tpu_custom_call.1} parent=39 // pred_region
          %211 = dma.done [#allocation3], 3072
        $region44: #{tpu_custom_call.1} parent=39 // pred_fallthru
          _
        %s212 = smul.u32 2, %s20
        %p213 = scmp.lt.s32.totalorder %s212, 3
        %s214 = scalar_select %p213, %s212, 3
        %s215 = smul.addr %s214, 8
        %s216 = scalar_lea.vmem %s0, %s215
        %p217 = pneg %p41
        %p218 = pneg %p38
        %p219 = pneg %p62
        %p220 = pneg %p59
        %p221 = pneg %p83
        %p222 = pneg %p80
        %p223 = pneg %p104
        %p224 = pneg %p101
        %p225 = pneg %p125
        %p226 = pneg %p122
        %p227 = pneg %p151
        %p228 = pneg %p148
        %s229 = sand.u32 %s138, 1
        %s230 = scalar_lea.sflag [#allocation4], %s229
        %s231 = sand.u32 %s138, 1
        %s232 = smul.addr %s231, 16
        %s233 = scalar_lea.vmem [#allocation5], %s232
        %s234 = smul.u32 2, %s20
        %p235 = scmp.lt.s32.totalorder %s234, 3
        %s236 = scalar_select %p235, %s234, 3
        %s237 = smul.addr %s236, 8
        %s238 = scalar_lea.vmem %s0, %s237
        %s239 = smul.u32 2, %s20
        %s240 = smul.u32 2, %s20
        %v241 = vld [vmem:[%s238] sm:$0xff]
        %v242 = vld [vmem:[%s238 + $0x8] sm:$0xff]
        %v243 = vrot.slane %v241, 7
        %v244 = vrot.slane %v242, 7
        %v245 = vlaneseq
        %v246 = vshrl.u32 %v245, 7
        %vm247 = vcmp.lt.s32.totalorder %v246, 1
        %v248 = vsel %vm247, %v243, %v244
        %v249 = vsel %vm247, %v244, %v243
        %v250 = vld [vmem:[%s3] sm:$0xff]
        %v251 = vld [vmem:[%s3 + $0x8] sm:$0xff]
        %253 = vset.pattern.permute.xlu0 0
        %254 = vperm.xlu0 %253, %v250
        %v255 = vpop.permute.xlu0 %254
        %258 = vset.pattern.permute.xlu0 0
        %259 = vperm.xlu0 %258, %v251
        %v260 = vpop.permute.xlu0 %259
        %v262 = vmul.f32 %v249, %v255
        %v263 = vmul.f32 %v248, %v260
        %v264 = vrot.slane %v241, 1
        %v265 = vrot.slane %v242, 1
        %vm266 = vcmp.lt.s32.totalorder %v246, 7
        %v267 = vsel %vm266, %v264, %v265
        %v268 = vsel %vm266, %v265, %v264
        %v269 = vld [vmem:[%s4] sm:$0xff]
        %v270 = vld [vmem:[%s4 + $0x8] sm:$0xff]
        %272 = vset.pattern.permute.xlu0 0
        %273 = vperm.xlu0 %272, %v269
        %v274 = vpop.permute.xlu0 %273
        %277 = vset.pattern.permute.xlu0 0
        %278 = vperm.xlu0 %277, %v270
        %v279 = vpop.permute.xlu0 %278
        %v281 = vmul.f32 %v267, %v274
        %v282 = vmul.f32 %v268, %v279
        %v283 = vld [vmem:[#allocation2] sm:$0xff]
        %v284 = vld [vmem:[#allocation2 + $0x8] sm:$0xff]
        %v285 = vld [vmem:[#allocation2 + $0x10] sm:$0xff]
        %v286 = vld [vmem:[#allocation2 + $0x18] sm:$0xff]
        %v287 = vld [vmem:[#allocation2 + $0x20] sm:$0xff]
        %v288 = vld [vmem:[#allocation2 + $0x28] sm:$0xff]
        %v289 = vld [vmem:[#allocation2 + $0x30] sm:$0xff]
        %v290 = vld [vmem:[#allocation2 + $0x38] sm:$0xff]
        %s291 = scalar_lea.vmem [#allocation2], 64
        %v292 = vld [vmem:[%s291] sm:$0xff]
        %v293 = vld [vmem:[%s291 + $0x8] sm:$0xff]
        %v294 = vld [vmem:[%s291 + $0x10] sm:$0xff]
        %v295 = vld [vmem:[%s291 + $0x18] sm:$0xff]
        %v296 = vld [vmem:[%s291 + $0x20] sm:$0xff]
        %v297 = vld [vmem:[%s291 + $0x28] sm:$0xff]
        %v298 = vld [vmem:[%s291 + $0x30] sm:$0xff]
        %v299 = vld [vmem:[%s291 + $0x38] sm:$0xff]
        %vm300 = vcmask 523264
        %v302 = vsel %vm300, %v241, 0
        %v305 = vsel %vm300, %v242, 0
        %307 = vmatprep.subr.mxu0 0.0
        %308 = vmatpush1.msra.mxu0 %v292
        %309 = vmatprep.subr.mxu0 0.0
        %310 = vmatpush1.msra.mxu0 %v293
        %311 = vmatprep.subr.mxu0 0.0
        %312 = vmatpush1.msra.mxu0 %v294
        %313 = vmatprep.subr.mxu0 0.0
        %314 = vmatpush1.msra.mxu0 %v295
        %315 = vmatprep.subr.mxu0 0.0
        %316 = vmatpush1.msra.mxu0 %v296
        %317 = vmatprep.subr.mxu0 0.0
        %318 = vmatpush1.msra.mxu0 %v297
        %319 = vmatprep.subr.mxu0 0.0
        %320 = vmatpush1.msra.mxu0 %v298
        %321 = vmatprep.subr.mxu0 0.0
        %322 = vmatpush1.msra.mxu0 %v299
        %323 = vmatprep.subr.mxu0 0.0
        %324 = vmatpush1.msra.mxu0 0.0
        %325 = vmatprep.subr.mxu0 0.0
        %326 = vmatpush1.msra.mxu0 0.0
        %327 = vmatprep.subr.mxu0 0.0
        %328 = vmatpush1.msra.mxu0 0.0
        %329 = vmatprep.subr.mxu0 0.0
        %330 = vmatpush1.msra.mxu0 0.0
        %331 = vmatprep.subr.mxu0 0.0
        %332 = vmatpush1.msra.mxu0 0.0
        %333 = vmatprep.subr.mxu0 0.0
        %334 = vmatpush1.msra.mxu0 0.0
        %335 = vmatprep.subr.mxu0 0.0
        %336 = vmatpush1.msra.mxu0 0.0
        %337 = vmatprep.subr.mxu0 0.0
        %338 = vmatpush1.msra.mxu0 0.0
        %339 = vmatprep.subr.mxu0 0.0
        %340 = vmatpush1.msra.mxu0 0.0
        %341 = vmatprep.subr.mxu0 0.0
        %342 = vmatpush1.msra.mxu0 0.0
        %343 = vmatprep.subr.mxu0 0.0
        %344 = vmatpush1.msra.mxu0 0.0
        %345 = vmatprep.subr.mxu0 0.0
        %346 = vmatpush1.msra.mxu0 0.0
        %347 = vmatprep.subr.mxu0 0.0
        %348 = vmatpush1.msra.mxu0 0.0
        %349 = vmatprep.subr.mxu0 0.0
        %350 = vmatpush1.msra.mxu0 0.0
        %351 = vmatprep.subr.mxu0 0.0
        %352 = vmatpush1.msra.mxu0 0.0
        %353 = vmatprep.subr.mxu0 0.0
        %354 = vmatpush1.msra.mxu0 0.0
        %355 = vmatprep.subr.mxu0 0.0
        %356 = vmatpush1.msra.mxu0 0.0
        %357 = vmatprep.subr.mxu0 0.0
        %358 = vmatpush1.msra.mxu0 0.0
        %359 = vmatprep.subr.mxu0 0.0
        %360 = vmatpush1.msra.mxu0 0.0
        %361 = vmatprep.subr.mxu0 0.0
        %362 = vmatpush1.msra.mxu0 0.0
        %363 = vmatprep.subr.mxu0 0.0
        %364 = vmatpush1.msra.mxu0 0.0
        %365 = vmatprep.subr.mxu0 0.0
        %366 = vmatpush1.msra.mxu0 0.0
        %367 = vmatprep.subr.mxu0 0.0
        %368 = vmatpush1.msra.mxu0 0.0
        %369 = vmatprep.subr.mxu0 0.0
        %370 = vmatpush1.msra.mxu0 0.0
        %371 = vmatprep.mubr.f32.mxu0 0.0
        %372 = vmatmul.mubr.f32.gmra.mrb[0].mxu0 %v302
        %v373 = vpop.f32.mrb[0].mxu0
        %v374 = vadd.f32 0.0, %v373
        %v375 = vpop.f32.mrb[0].mxu0
        %376 = vmatprep.mubr.f32.mxu0 0.0
        %377 = vmatmul.mubr.f32.gmra.mrb[0].mxu0 %v305
        %v378 = vpop.f32.mrb[0].mxu0
        %v379 = vadd.f32 0.0, %v378
        %v380 = vpop.f32.mrb[0].mxu0
        %381 = vdwg.mxu0
        %v383 = vsel %vm300, %v262, 0
        %v386 = vsel %vm300, %v263, 0
        %388 = vmatprep.subr.mxu0 0.0
        %389 = vmatpush1.msra.mxu0 %v283
        %390 = vmatprep.subr.mxu0 0.0
        %391 = vmatpush1.msra.mxu0 %v284
        %392 = vmatprep.subr.mxu0 0.0
        %393 = vmatpush1.msra.mxu0 %v285
        %394 = vmatprep.subr.mxu0 0.0
        %395 = vmatpush1.msra.mxu0 %v286
        %396 = vmatprep.subr.mxu0 0.0
        %397 = vmatpush1.msra.mxu0 %v287
        %398 = vmatprep.subr.mxu0 0.0
        %399 = vmatpush1.msra.mxu0 %v288
        %400 = vmatprep.subr.mxu0 0.0
        %401 = vmatpush1.msra.mxu0 %v289
        %402 = vmatprep.subr.mxu0 0.0
        %403 = vmatpush1.msra.mxu0 %v290
        %404 = vmatprep.subr.mxu0 0.0
        %405 = vmatpush1.msra.mxu0 0.0
        %406 = vmatprep.subr.mxu0 0.0
        %407 = vmatpush1.msra.mxu0 0.0
        %408 = vmatprep.subr.mxu0 0.0
        %409 = vmatpush1.msra.mxu0 0.0
        %410 = vmatprep.subr.mxu0 0.0
        %411 = vmatpush1.msra.mxu0 0.0
        %412 = vmatprep.subr.mxu0 0.0
        %413 = vmatpush1.msra.mxu0 0.0
        %414 = vmatprep.subr.mxu0 0.0
        %415 = vmatpush1.msra.mxu0 0.0
        %416 = vmatprep.subr.mxu0 0.0
        %417 = vmatpush1.msra.mxu0 0.0
        %418 = vmatprep.subr.mxu0 0.0
        %419 = vmatpush1.msra.mxu0 0.0
        %420 = vmatprep.subr.mxu0 0.0
        %421 = vmatpush1.msra.mxu0 0.0
        %422 = vmatprep.subr.mxu0 0.0
        %423 = vmatpush1.msra.mxu0 0.0
        %424 = vmatprep.subr.mxu0 0.0
        %425 = vmatpush1.msra.mxu0 0.0
        %426 = vmatprep.subr.mxu0 0.0
        %427 = vmatpush1.msra.mxu0 0.0
        %428 = vmatprep.subr.mxu0 0.0
        %429 = vmatpush1.msra.mxu0 0.0
        %430 = vmatprep.subr.mxu0 0.0
        %431 = vmatpush1.msra.mxu0 0.0
        %432 = vmatprep.subr.mxu0 0.0
        %433 = vmatpush1.msra.mxu0 0.0
        %434 = vmatprep.subr.mxu0 0.0
        %435 = vmatpush1.msra.mxu0 0.0
        %436 = vmatprep.subr.mxu0 0.0
        %437 = vmatpush1.msra.mxu0 0.0
        %438 = vmatprep.subr.mxu0 0.0
        %439 = vmatpush1.msra.mxu0 0.0
        %440 = vmatprep.subr.mxu0 0.0
        %441 = vmatpush1.msra.mxu0 0.0
        %442 = vmatprep.subr.mxu0 0.0
        %443 = vmatpush1.msra.mxu0 0.0
        %444 = vmatprep.subr.mxu0 0.0
        %445 = vmatpush1.msra.mxu0 0.0
        %446 = vmatprep.subr.mxu0 0.0
        %447 = vmatpush1.msra.mxu0 0.0
        %448 = vmatprep.subr.mxu0 0.0
        %449 = vmatpush1.msra.mxu0 0.0
        %450 = vmatprep.subr.mxu0 0.0
        %451 = vmatpush1.msra.mxu0 0.0
        %452 = vmatprep.mubr.f32.mxu0 0.0
        %453 = vmatmul.mubr.f32.gmra.mrb[0].mxu0 %v383
        %v454 = vpop.f32.mrb[0].mxu0
        %v455 = vadd.f32 %v374, %v454
        %v456 = vpop.f32.mrb[0].mxu0
        %457 = vmatprep.mubr.f32.mxu0 0.0
        %458 = vmatmul.mubr.f32.gmra.mrb[0].mxu0 %v386
        %v459 = vpop.f32.mrb[0].mxu0
        %v460 = vadd.f32 %v379, %v459
        %v461 = vpop.f32.mrb[0].mxu0
        %462 = vdwg.mxu0
        %s463 = scalar_lea.vmem [#allocation2], 128
        %v464 = vld [vmem:[%s463] sm:$0xff]
        %v465 = vld [vmem:[%s463 + $0x8] sm:$0xff]
        %v466 = vld [vmem:[%s463 + $0x10] sm:$0xff]
        %v467 = vld [vmem:[%s463 + $0x18] sm:$0xff]
        %v468 = vld [vmem:[%s463 + $0x20] sm:$0xff]
        %v469 = vld [vmem:[%s463 + $0x28] sm:$0xff]
        %v470 = vld [vmem:[%s463 + $0x30] sm:$0xff]
        %v471 = vld [vmem:[%s463 + $0x38] sm:$0xff]
        %v473 = vsel %vm300, %v281, 0
        %v476 = vsel %vm300, %v282, 0
        %478 = vmatprep.subr.mxu0 0.0
        %479 = vmatpush1.msra.mxu0 %v464
        %480 = vmatprep.subr.mxu0 0.0
        %481 = vmatpush1.msra.mxu0 %v465
        %482 = vmatprep.subr.mxu0 0.0
        %483 = vmatpush1.msra.mxu0 %v466
        %484 = vmatprep.subr.mxu0 0.0
        %485 = vmatpush1.msra.mxu0 %v467
        %486 = vmatprep.subr.mxu0 0.0
        %487 = vmatpush1.msra.mxu0 %v468
        %488 = vmatprep.subr.mxu0 0.0
        %489 = vmatpush1.msra.mxu0 %v469
        %490 = vmatprep.subr.mxu0 0.0
        %491 = vmatpush1.msra.mxu0 %v470
        %492 = vmatprep.subr.mxu0 0.0
        %493 = vmatpush1.msra.mxu0 %v471
        %494 = vmatprep.subr.mxu0 0.0
        %495 = vmatpush1.msra.mxu0 0.0
        %496 = vmatprep.subr.mxu0 0.0
        %497 = vmatpush1.msra.mxu0 0.0
        %498 = vmatprep.subr.mxu0 0.0
        %499 = vmatpush1.msra.mxu0 0.0
        %500 = vmatprep.subr.mxu0 0.0
        %501 = vmatpush1.msra.mxu0 0.0
        %502 = vmatprep.subr.mxu0 0.0
        %503 = vmatpush1.msra.mxu0 0.0
        %504 = vmatprep.subr.mxu0 0.0
        %505 = vmatpush1.msra.mxu0 0.0
        %506 = vmatprep.subr.mxu0 0.0
        %507 = vmatpush1.msra.mxu0 0.0
        %508 = vmatprep.subr.mxu0 0.0
        %509 = vmatpush1.msra.mxu0 0.0
        %510 = vmatprep.subr.mxu0 0.0
        %511 = vmatpush1.msra.mxu0 0.0
        %512 = vmatprep.subr.mxu0 0.0
        %513 = vmatpush1.msra.mxu0 0.0
        %514 = vmatprep.subr.mxu0 0.0
        %515 = vmatpush1.msra.mxu0 0.0
        %516 = vmatprep.subr.mxu0 0.0
        %517 = vmatpush1.msra.mxu0 0.0
        %518 = vmatprep.subr.mxu0 0.0
        %519 = vmatpush1.msra.mxu0 0.0
        %520 = vmatprep.subr.mxu0 0.0
        %521 = vmatpush1.msra.mxu0 0.0
        %522 = vmatprep.subr.mxu0 0.0
        %523 = vmatpush1.msra.mxu0 0.0
        %524 = vmatprep.subr.mxu0 0.0
        %525 = vmatpush1.msra.mxu0 0.0
        %526 = vmatprep.subr.mxu0 0.0
        %527 = vmatpush1.msra.mxu0 0.0
        %528 = vmatprep.subr.mxu0 0.0
        %529 = vmatpush1.msra.mxu0 0.0
        %530 = vmatprep.subr.mxu0 0.0
        %531 = vmatpush1.msra.mxu0 0.0
        %532 = vmatprep.subr.mxu0 0.0
        %533 = vmatpush1.msra.mxu0 0.0
        %534 = vmatprep.subr.mxu0 0.0
        %535 = vmatpush1.msra.mxu0 0.0
        %536 = vmatprep.subr.mxu0 0.0
        %537 = vmatpush1.msra.mxu0 0.0
        %538 = vmatprep.subr.mxu0 0.0
        %539 = vmatpush1.msra.mxu0 0.0
        %540 = vmatprep.subr.mxu0 0.0
        %541 = vmatpush1.msra.mxu0 0.0
        %542 = vmatprep.mubr.f32.mxu0 0.0
        %543 = vmatmul.mubr.f32.gmra.mrb[0].mxu0 %v473
        %v544 = vpop.f32.mrb[0].mxu0
        %v545 = vadd.f32 0.0, %v544
        %v546 = vpop.f32.mrb[0].mxu0
        %547 = vmatprep.mubr.f32.mxu0 0.0
        %548 = vmatmul.mubr.f32.gmra.mrb[0].mxu0 %v476
        %v549 = vpop.f32.mrb[0].mxu0
        %v550 = vadd.f32 0.0, %v549
        %v551 = vpop.f32.mrb[0].mxu0
        %552 = vdwg.mxu0
        %v553 = vadd.f32 %v455, %v545
        %v554 = vadd.f32 %v460, %v550
        %v555 = vld [vmem:[%s2] sm:$0x1]
        %v557 = vlaneseq
        %v558 = vshrl.u32 %v557, 7
        %v559 = vsub.s32 0, %v558
        %v560 = vrot.slane %v555, %v559
        %v562 = vadd.f32 %v553, %v560
        %v563 = vadd.f32 %v554, %v560
        %v564 = vmax.f32 %v562, 0.0
        %v565 = vmax.f32 %v563, 0.0
        %566 = vst [vmem:[%s233] sm:$0xff] %v564
        %567 = vst [vmem:[%s233 + $0x8] sm:$0xff] %v565
        %s568 = sand.u32 %s138, 1
        %s569 = scalar_lea.sflag [#allocation4], %s568
        %s570 = sand.u32 %s138, 1
        %s571 = smul.addr %s570, 16
        %s572 = scalar_lea.vmem [#allocation5], %s571
        // Predicated region
        $region45: #{tpu_custom_call.1} parent=39 // pred_check
          %p573 = pneg %p148
        $region46: #{tpu_custom_call.1} parent=39 // pred_check_branch
          %575 = sbr.rel (%p573) target = $region48
        $region47: #{tpu_custom_call.1} parent=39 // pred_region
          %s576 = smul.u32 2, %s20
          %s578 = ssub.s32 256, 256
          %579 = vsyncadd %s569, %s578
          %s580 = smul.addr %s576, 128
          %s581 = scalar_lea.hbm %s5, %s580
          %s582 = sshll.u32 %s572, 4
          %s583 = int_to_ptr.vmem [resolvable:$true] %s582
          %588 = dma.vmem_to_hbm [thread:$0]  %s583, 256, %s581, %s569, 128, 128, 8
        $region48: #{tpu_custom_call.1} parent=39 // pred_fallthru
          _
      $region40: #{tpu_custom_call.1} parent=5 // pred_fallthru
        _
      %p589 = scmp.le.s32.totalorder 2, %s15
      // Predicated region
      $region49: #{tpu_custom_call.1} parent=5 // pred_check
        %p590 = pneg %p589
      $region50: #{tpu_custom_call.1} parent=5 // pred_check_branch
        %592 = sbr.rel (%p590) target = $region52
      $region51: #{tpu_custom_call.1} parent=5 // pred_region
        %s593 = ssub.s32 %s15, 2
        // Predicated region
        $region53: #{tpu_custom_call.1} parent=51 // pred_check
          %p594 = pneg %p154
        $region54: #{tpu_custom_call.1} parent=51 // pred_check_branch
          %596 = sbr.rel (%p594) target = $region56
        $region55: #{tpu_custom_call.1} parent=51 // pred_region
          %s597 = sand.u32 %s139, 1
          %s598 = scalar_lea.sflag [#allocation4], %s597
          %s599 = sand.u32 %s139, 1
          %s600 = smul.addr %s599, 16
          %s601 = scalar_lea.vmem [#allocation5], %s600
          %602 = dma.done %s598, 256
        $region56: #{tpu_custom_call.1} parent=51 // pred_fallthru
          _
      $region52: #{tpu_custom_call.1} parent=5 // pred_fallthru
        _
    $region6: #{tpu_custom_call.1} parent=1 // loop_footer
      %s19 = sadd.s32 1, %s15
    $region7: #{tpu_custom_call.1} parent=1 // loop_footer_branch
      %14 = sbr.rel target = $region3
    $region8: #{tpu_custom_call.1} parent=1 // loop_exit
      _
    %603 = vsyncpa [#allocation3], 1
    %s604 = scalar_lea.sflag [#allocation3], 1
    %605 = vsyncpa %s604, 1
    %606 = vsyncpa [#allocation4], 1
    %s607 = scalar_lea.sflag [#allocation4], 1
    %608 = vsyncpa %s607, 1

</llo_original>
